<compile_context>
chip_gen: v5e
topology: v5e:2x2
jax: 0.10.0
libtpu: 0.0.40
codegen_flags: <defaults>
</compile_context>

<pallas_src>
import functools

import jax
import jax.numpy as jnp
from jax import lax
from jax.experimental import pallas as pl
from jax.experimental.pallas import tpu as pltpu


def _ce_label_smooth_kernel(logits_ref, labels_ref, out_ref, acc_ref, *,
                            epsilon, num_classes, batch_total, tile_b,
                            steps_per_core, core_splits):
    c = pl.program_id(0)          # core-split axis
    i = pl.program_id(1)          # batch-tile axis (reduction)

    @pl.when(i == 0)
    def _init():
        acc_ref[...] = jnp.zeros_like(acc_ref)

    x_in = logits_ref[...]                                   # (tile_b, K) input dtype
    xf = x_in.astype(jnp.float32)                            # single upcast
    tb, k = xf.shape

    m = jnp.max(xf, axis=1, keepdims=True)                   # (tile_b, 1)
    d = m - xf                                               # (tile_b, K), >= 0

    # Smoothed-target weights via a (1, K) iota broadcast against the labels.
    labels = labels_ref[...]                                 # (tile_b, 1) int32
    cls_ids = lax.broadcasted_iota(jnp.int32, (1, k), 1)     # (1, K)
    w_miss = epsilon / num_classes
    w_hit = (1.0 - epsilon) + w_miss
    w = jnp.where(cls_ids == labels, w_hit, w_miss)          # (tile_b, K) f32

    # Cancellation-free closed form (sum_k w_k == 1):
    #   -sum_k w_k * log_softmax(x)_k = lse + sum_k w_k * (m - x_k)
    lse = jnp.log(jnp.sum(jnp.exp(-d), axis=1, keepdims=True))
    wsum = jnp.sum(w * d, axis=1, keepdims=True)
    row_loss = lse + wsum                                    # (tile_b, 1) f32

    # Zero rows past the real batch (ragged last tile / clamped padded block).
    block_idx = i * core_splits + c                          # unclamped, interleaved
    row_start = block_idx * tile_b
    row_ids = row_start + lax.broadcasted_iota(jnp.int32, (tb, 1), 0)
    row_loss = jnp.where(row_ids < batch_total, row_loss, 0.0)

    acc_ref[...] += jnp.sum(row_loss)                        # (1, 1) scalar accumulator

    @pl.when(i == steps_per_core - 1)
    def _finalize():
        part = jnp.sum(acc_ref[...]) * (1.0 / batch_total)
        # Lane-dense, unmasked store of this core's partial (wrapper sums them).
        out_ref[...] = jnp.full(out_ref.shape, part, dtype=out_ref.dtype)


def _device_kind():
    try:
        return (jax.devices()[0].device_kind or "").lower()
    except Exception:
        return ""


def _tpu_topology():
    """Returns (physical VMEM bytes per TensorCore, TCs per chip, is_v7x)."""
    kind = _device_kind()
    is_v7 = "7" in kind
    if is_v7:
        default_vmem = 64 << 20
    elif any(t in kind for t in ("v5 lite", "v5e", "v6 lite", "v6e")):
        default_vmem = 128 << 20
    elif any(t in kind for t in ("v2", "v3")):
        default_vmem = 16 << 20
    else:
        default_vmem = 64 << 20          # conservative for unknown chips
    vmem = default_vmem
    try:
        info = pltpu.get_tpu_info()
        cap = int(getattr(info, "vmem_capacity_bytes", 0) or 0)
        if cap > 0:
            vmem = cap
    except Exception:
        pass
    return vmem, (2 if is_v7 else 1), is_v7


# Allowance for full-tile f32 temporaries Mosaic may materialize per streamed
# tile (f32 upcast, m - x, exp(-d), weight select, weighted product, ...).
_F32_TEMPS_PER_ELEM = 6


def cross_entropy_label_smooth(logits, targets, *, num_classes=None,
                               epsilon=0.1, tile_b=None, core_splits=None):
    """logits: (B, K) float, targets: (B,) int -> scalar float32 loss."""
    B, K = logits.shape
    if num_classes is None:
        num_classes = K
    assert K == num_classes

    itemsize = jnp.dtype(logits.dtype).itemsize
    vmem_phys, num_tc, is_v7 = _tpu_topology()

    # Sub-32-bit dtypes pack along sublanes: 8 rows f32, 16 bf16, 32 int8/fp8.
    sublane_mult = 8 * max(1, 4 // max(1, itemsize))
    b_pad = ((B + sublane_mult - 1) // sublane_mult) * sublane_mult

    # Per-row VMEM footprint: double-buffered logits stream (input dtype),
    # the f32 temporaries of the elementwise chain, and the lane-padded
    # labels stream.
    per_row_bytes = (2 * K * itemsize
                     + _F32_TEMPS_PER_ELEM * K * 4
                     + 2 * 128 * 4)

    if tile_b is None:
        budget = vmem_phys // 2            # leave half of VMEM as slack
        tile_b = max(sublane_mult, budget // per_row_bytes)
    tile_b = max(sublane_mult, (int(tile_b) // sublane_mult) * sublane_mult)
    tile_b = min(tile_b, b_pad)

    num_blocks = pl.cdiv(B, tile_b)
    if core_splits is None:
        core_splits = num_tc if num_blocks >= 2 else 1
    core_splits = max(1, int(core_splits))
    steps_per_core = pl.cdiv(num_blocks, core_splits)

    labels2d = targets.astype(jnp.int32).reshape(B, 1)

    def block_map(c, i):
        # Interleave blocks across cores; clamp so padded grid steps never
        # issue a fully out-of-bounds DMA (their rows are masked to zero).
        return (jnp.minimum(i * core_splits + c, num_blocks - 1), 0)

    kernel = functools.partial(
        _ce_label_smooth_kernel,
        epsilon=float(epsilon),
        num_classes=int(num_classes),
        batch_total=int(B),
        tile_b=int(tile_b),
        steps_per_core=int(steps_per_core),
        core_splits=int(core_splits),
    )

    # VMEM accounting (per TensorCore), with 2x headroom, under physical VMEM.
    need = int(tile_b) * per_row_bytes + (4 << 20)
    vmem_limit = int(min(vmem_phys - (4 << 20), max(2 * need, 32 << 20)))

    # On v7x the 2-way leading axis must be CORE_PARALLEL to actually shard
    # across the two TensorCores; fall back to "parallel" if it is rejected.
    if core_splits > 1 and is_v7 and hasattr(pltpu, "CORE_PARALLEL"):
        sem_candidates = [(pltpu.CORE_PARALLEL, pltpu.ARBITRARY),
                          ("parallel", "arbitrary")]
    elif core_splits > 1:
        sem_candidates = [("parallel", "arbitrary")]
    else:
        sem_candidates = [("arbitrary", "arbitrary")]

    def build(dim_sems):
        return pl.pallas_call(
            kernel,
            out_shape=jax.ShapeDtypeStruct((core_splits, 8, 128), jnp.float32),
            grid_spec=pltpu.PrefetchScalarGridSpec(
                num_scalar_prefetch=0,
                grid=(core_splits, steps_per_core),
                in_specs=[
                    pl.BlockSpec((tile_b, K), block_map),    # logits tile
                    pl.BlockSpec((tile_b, 1), block_map),    # labels tile
                ],
                out_specs=pl.BlockSpec((1, 8, 128), lambda c, i: (c, 0, 0)),
                scratch_shapes=[pltpu.VMEM((1, 1), jnp.float32)],
            ),
            compiler_params=pltpu.CompilerParams(
                dimension_semantics=dim_sems,
                vmem_limit_bytes=vmem_limit,
            ),
            cost_estimate=pl.CostEstimate(
                flops=6 * B * K,
                transcendentals=B * K,
                bytes_accessed=B * K * itemsize + B * 4
                               + core_splits * 8 * 128 * 4,
            ),
        )

    out = None
    last_err = None
    for dim_sems in sem_candidates:
        try:
            out = build(dim_sems)(logits, labels2d)
            break
        except Exception as e:   # e.g. CORE_PARALLEL unsupported -> retry
            last_err = e
            out = None
    if out is None:
        raise last_err

    # One partial per core split -> total loss.
    return jnp.sum(out[:, 0, 0])


def _reference(logits, targets, num_classes, epsilon=0.1):
    logits = logits.astype(jnp.float32)
    log_probs = jax.nn.log_softmax(logits, axis=1)
    onehot = jax.nn.one_hot(targets, num_classes, dtype=jnp.float32)
    t = (1.0 - epsilon) * onehot + epsilon / num_classes
    return jnp.sum(jnp.mean(-t * log_probs, axis=0))


if __name__ == "__main__":
    key = jax.random.PRNGKey(0)
    eps = 0.1
    k1, k2, k3, k4, k5, k6 = jax.random.split(key, 6)

    # Case 1: aligned shapes, auto tile selection (single block, no split).
    B1, K1 = 16, 128
    logits1 = jax.random.normal(k1, (B1, K1), dtype=jnp.float32)
    targets1 = jax.random.randint(k2, (B1,), 0, K1, dtype=jnp.int32)
    loss1 = jax.block_until_ready(
        cross_entropy_label_smooth(logits1, targets1, num_classes=K1, epsilon=eps))
    ref1 = _reference(logits1, targets1, K1, eps)
    assert jnp.allclose(loss1, ref1, rtol=1e-5, atol=1e-5), (loss1, ref1)

    # Case 2: ragged batch and class count, forced small tile -> multi-block
    # grid with row masking and a clamped padded block.
    B2, K2 = 20, 130
    logits2 = jax.random.normal(k3, (B2, K2), dtype=jnp.float32)
    targets2 = jax.random.randint(k4, (B2,), 0, K2, dtype=jnp.int32)
    loss2 = jax.block_until_ready(
        cross_entropy_label_smooth(logits2, targets2, num_classes=K2,
                                   epsilon=eps, tile_b=8))
    ref2 = _reference(logits2, targets2, K2, eps)
    assert jnp.allclose(loss2, ref2, rtol=1e-5, atol=1e-5), (loss2, ref2)

    # Case 3: bf16 logits (16-row sublane packing), explicit 2-way core split
    # and a ragged last block.
    B3, K3 = 24, 256
    logits3 = jax.random.normal(k5, (B3, K3), dtype=jnp.float32).astype(jnp.bfloat16)
    targets3 = jax.random.randint(k6, (B3,), 0, K3, dtype=jnp.int32)
    loss3 = jax.block_until_ready(
        cross_entropy_label_smooth(logits3, targets3, num_classes=K3,
                                   epsilon=eps, tile_b=16, core_splits=2))
    ref3 = _reference(logits3, targets3, K3, eps)
    assert jnp.allclose(loss3, ref3, rtol=2e-3, atol=2e-3), (loss3, ref3)

    print("KERNEL_OK")
</pallas_src>

<mosaic_0001>
module attributes {stable_mosaic.version = 11 : i64} {
  func.func @_ce_label_smooth_kernel(%arg0: i32, %arg1: i32, %arg2: memref<16x128xf32, #tpu.memory_space<vmem>>, %arg3: memref<16x1xi32, #tpu.memory_space<vmem>>, %arg4: memref<1x8x128xf32, #tpu.memory_space<vmem>>, %arg5: memref<1x1xf32, #tpu.memory_space<vmem>>) attributes {dimension_semantics = [#tpu.dimension_semantics<arbitrary>, #tpu.dimension_semantics<arbitrary>], iteration_bounds = array<i64: 1, 1>, scalar_prefetch = 0 : i64, scratch_operands = 1 : i64, tpu.core_type = #tpu.core_type<tc>, window_params = [{transform_indices = @transform_0, window_bounds = array<i64: 16, 128>}, {transform_indices = @transform_1, window_bounds = array<i64: 16, 1>}, {transform_indices = @transform_2, window_bounds = array<i64: 1, 8, 128>}]} {
    %c0_i32 = arith.constant 0 : i32
    %0 = arith.cmpi eq, %arg1, %c0_i32 : i32
    %1 = arith.extui %0 : i1 to i32
    %c0_i32_0 = arith.constant 0 : i32
    %2 = arith.cmpi ne, %1, %c0_i32_0 : i32
    scf.if %2 {
      %cst_18 = arith.constant 0.000000e+00 : f32
      %47 = vector.broadcast %cst_18 : f32 to vector<1x1xf32>
      %c0_19 = arith.constant 0 : index
      %c0_20 = arith.constant 0 : index
      %48 = vector.load %arg5[%c0_19, %c0_20] : memref<1x1xf32, #tpu.memory_space<vmem>>, vector<1x1xf32>
      tpu.vector_store %arg5[%c0_19, %c0_20], %47 {strides = array<i32>} : memref<1x1xf32, #tpu.memory_space<vmem>>, vector<1x1xf32>,
    } else {
    }
    %c0 = arith.constant 0 : index
    %c0_1 = arith.constant 0 : index
    %3 = vector.load %arg2[%c0, %c0_1] : memref<16x128xf32, #tpu.memory_space<vmem>>, vector<16x128xf32>
    %cst = arith.constant dense<0xFF800000> : vector<16xf32>
    %4 = vector.multi_reduction <maximumf>, %3, %cst [1] : vector<16x128xf32> to vector<16xf32>
    %5 = vector.shape_cast %4 : vector<16xf32> to vector<16x1xf32>
    %6 = vector.broadcast %5 : vector<16x1xf32> to vector<16x128xf32>
    %7 = arith.subf %6, %3 : vector<16x128xf32>
    %c0_2 = arith.constant 0 : index
    %c0_3 = arith.constant 0 : index
    %8 = vector.load %arg3[%c0_2, %c0_3] : memref<16x1xi32, #tpu.memory_space<vmem>>, vector<16x1xi32>
    %9 = tpu.iota {dimensions = array<i32: 1>} : vector<1x128xi32>
    %10 = vector.broadcast %9 : vector<1x128xi32> to vector<16x128xi32>
    %11 = vector.broadcast %8 : vector<16x1xi32> to vector<16x128xi32>
    %12 = arith.cmpi eq, %10, %11 : vector<16x128xi32>
    %cst_4 = arith.constant 0.900781273 : f32
    %cst_5 = arith.constant 7.812500e-04 : f32
    %13 = vector.broadcast %cst_4 : f32 to vector<16x128xf32>
    %14 = vector.broadcast %cst_5 : f32 to vector<16x128xf32>
    %15 = arith.select %12, %13, %14 : vector<16x128xi1>, vector<16x128xf32>
    %cst_6 = arith.constant 0.000000e+00 : f32
    %16 = vector.broadcast %cst_6 : f32 to vector<16x128xf32>
    %17 = arith.subf %16, %7 : vector<16x128xf32>
    %18 = math.exp %17 : vector<16x128xf32>
    %cst_7 = arith.constant dense<0.000000e+00> : vector<16xf32>
    %19 = vector.multi_reduction <add>, %18, %cst_7 [1] : vector<16x128xf32> to vector<16xf32>
    %20 = vector.shape_cast %19 : vector<16xf32> to vector<16x1xf32>
    %21 = math.log %20 : vector<16x1xf32>
    %22 = arith.mulf %15, %7 : vector<16x128xf32>
    %cst_8 = arith.constant dense<0.000000e+00> : vector<16xf32>
    %23 = vector.multi_reduction <add>, %22, %cst_8 [1] : vector<16x128xf32> to vector<16xf32>
    %24 = vector.shape_cast %23 : vector<16xf32> to vector<16x1xf32>
    %25 = arith.addf %21, %24 : vector<16x1xf32>
    %c1_i32 = arith.constant 1 : i32
    %26 = arith.muli %arg1, %c1_i32 : i32
    %27 = arith.addi %26, %arg0 : i32
    %c16_i32 = arith.constant 16 : i32
    %28 = arith.muli %27, %c16_i32 : i32
    %29 = tpu.iota {dimensions = array<i32: 0>} : vector<16x1xi32>
    %30 = vector.broadcast %28 : i32 to vector<16x1xi32>
    %31 = arith.addi %30, %29 : vector<16x1xi32>
    %c16_i32_9 = arith.constant 16 : i32
    %32 = vector.broadcast %c16_i32_9 : i32 to vector<16x1xi32>
    %33 = arith.cmpi slt, %31, %32 : vector<16x1xi32>
    %cst_10 = arith.constant 0.000000e+00 : f32
    %34 = vector.broadcast %cst_10 : f32 to vector<16x1xf32>
    %35 = arith.select %33, %25, %34 : vector<16x1xi1>, vector<16x1xf32>
    %c0_11 = arith.constant 0 : index
    %c0_12 = arith.constant 0 : index
    %36 = vector.load %arg5[%c0_11, %c0_12] : memref<1x1xf32, #tpu.memory_space<vmem>>, vector<1x1xf32>
    %37 = vector.shape_cast %35 : vector<16x1xf32> to vector<1x16x1xf32>
    %cst_13 = arith.constant dense<0.000000e+00> : vector<1xf32>
    %38 = vector.multi_reduction <add>, %37, %cst_13 [1, 2] : vector<1x16x1xf32> to vector<1xf32>
    %39 = vector.shape_cast %38 : vector<1xf32> to vector<1x1x1xf32>
    %40 = vector.extract %39[0, 0, 0] : f32 from vector<1x1x1xf32>
    %41 = vector.broadcast %40 : f32 to vector<1x1xf32>
    %42 = arith.addf %36, %41 : vector<1x1xf32>
    %c0_14 = arith.constant 0 : index
    %c0_15 = arith.constant 0 : index
    %43 = vector.load %arg5[%c0_14, %c0_15] : memref<1x1xf32, #tpu.memory_space<vmem>>, vector<1x1xf32>
    tpu.vector_store %arg5[%c0_14, %c0_15], %42 {strides = array<i32>} : memref<1x1xf32, #tpu.memory_space<vmem>>, vector<1x1xf32>,
    %c0_i32_16 = arith.constant 0 : i32
    %44 = arith.cmpi eq, %arg1, %c0_i32_16 : i32
    %45 = arith.extui %44 : i1 to i32
    %c0_i32_17 = arith.constant 0 : i32
    %46 = arith.cmpi ne, %45, %c0_i32_17 : i32
    scf.if %46 {
      %c0_18 = arith.constant 0 : index
      %c0_19 = arith.constant 0 : index
      %47 = vector.load %arg5[%c0_18, %c0_19] : memref<1x1xf32, #tpu.memory_space<vmem>>, vector<1x1xf32>
      %48 = vector.shape_cast %47 : vector<1x1xf32> to vector<1x1x1xf32>
      %cst_20 = arith.constant dense<0.000000e+00> : vector<1xf32>
      %49 = vector.multi_reduction <add>, %48, %cst_20 [1, 2] : vector<1x1x1xf32> to vector<1xf32>
      %50 = vector.shape_cast %49 : vector<1xf32> to vector<1x1x1xf32>
      %51 = vector.extract %50[0, 0, 0] : f32 from vector<1x1x1xf32>
      %cst_21 = arith.constant 6.250000e-02 : f32
      %52 = arith.mulf %51, %cst_21 : f32
      %53 = vector.broadcast %52 : f32 to vector<1x8x128xf32>
      %c0_22 = arith.constant 0 : index
      %c0_23 = arith.constant 0 : index
      %c0_24 = arith.constant 0 : index
      %54 = vector.load %arg4[%c0_22, %c0_23, %c0_24] : memref<1x8x128xf32, #tpu.memory_space<vmem>>, vector<1x8x128xf32>
      tpu.vector_store %arg4[%c0_22, %c0_23, %c0_24], %53 {strides = array<i32>} : memref<1x8x128xf32, #tpu.memory_space<vmem>>, vector<1x8x128xf32>,
    } else {
    }
    return
  }
  func.func @transform_0(%arg0: i32, %arg1: i32) -> (i32, i32) {
    %c1_i32 = arith.constant 1 : i32
    %0 = arith.muli %arg1, %c1_i32 : i32
    %1 = arith.addi %0, %arg0 : i32
    %c0_i32 = arith.constant 0 : i32
    %2 = arith.minsi %1, %c0_i32 : i32
    %c0_i32_0 = arith.constant 0 : i32
    %c0_i32_1 = arith.constant 0 : i32
    return %2, %c0_i32_0 : i32, i32
  }
  func.func @transform_1(%arg0: i32, %arg1: i32) -> (i32, i32) {
    %c1_i32 = arith.constant 1 : i32
    %0 = arith.muli %arg1, %c1_i32 : i32
    %1 = arith.addi %0, %arg0 : i32
    %c0_i32 = arith.constant 0 : i32
    %2 = arith.minsi %1, %c0_i32 : i32
    %c0_i32_0 = arith.constant 0 : i32
    %c0_i32_1 = arith.constant 0 : i32
    return %2, %c0_i32_0 : i32, i32
  }
  func.func @transform_2(%arg0: i32, %arg1: i32) -> (i32, i32, i32) {
    %c0_i32 = arith.constant 0 : i32
    %c0_i32_0 = arith.constant 0 : i32
    %c0_i32_1 = arith.constant 0 : i32
    return %arg0, %c0_i32, %c0_i32_0 : i32, i32, i32
  }
}

</mosaic_0001>

<llo_original>
// kernel: tpu_custom_call.1
$region0: #{tpu_custom_call.1}
  #allocation0 [shape = 'u32[]', space=smem, size = 0x4, offset = 0x4, fixed_abs, tag = 'smem constant byte address 0x4 - core index']
  #allocation1 [shape = 'u32[72,128]{1,0:T(1,128)}', space=vmem, size = 0x9000, scoped, tag = 'internal scratch']
  #allocation2 [shape = 'f32[1,1]{1,0:T(1,128)}', space=vmem, size = 0x200, scoped, tag = 'scratch operand']
  %s0 = inlined_call_operand.vmem [shape: f32[16,128], index: 0, kind: input, shape index: {}]
  %s1 = inlined_call_operand.vmem [shape: s32[16,1], index: 1, kind: input, shape index: {}]
  %s2 = inlined_call_operand.hbm [shape: f32[1,8,128], index: 2, kind: output, shape index: {}]
  %s3 = sld [smem:[#allocation0]]
  $region26: #{tpu_custom_call.1} parent=0
    _
  %s5 = ssub.s32 1, %s3
  %s6 = scalar_select 0, %s5, %s3
  $region1: #{tpu_custom_call.1} parent=0
    #allocation3 [shape = 'u8[4096]{0}', space=vmem, size = 0x1000, scoped, tag = 'output window, operand 0, single buffered']
    #allocation4 [shape = 's32[1]{0}', space=sflag, size = 0x4, scoped, tag = 'scoped memory for tpu_custom_call.1']
    %7 = vsyncpa [#allocation4], 0
    // Predicated region
    $region2: #{tpu_custom_call.1} parent=1 // pred_check
      _
    $region3: #{tpu_custom_call.1} parent=1 // pred_check_branch
      %9 = sbr.rel (0) target = $region5
    $region4: #{tpu_custom_call.1} parent=1 // pred_region
      %s10 = sadd.s32 0, 0
      %p11 = scmp.lt.s32.totalorder %s10, 0
      %s12 = scalar_select %p11, %s10, 0
      %s13 = smul.u32 2, %s12
      %p14 = scmp.lt.s32.totalorder %s13, 1
      %s15 = scalar_select %p14, %s13, 1
      %s16 = smul.addr %s15, 8
      %s17 = scalar_lea.vmem %s0, %s16
      %s18 = sadd.s32 0, 0
      %p19 = scmp.lt.s32.totalorder %s18, 0
      %s20 = scalar_select %p19, %s18, 0
      %s21 = smul.u32 2, %s20
    $region5: #{tpu_custom_call.1} parent=1 // pred_fallthru
      _
    // Predicated region
    $region6: #{tpu_custom_call.1} parent=1 // pred_check
      _
    $region7: #{tpu_custom_call.1} parent=1 // pred_check_branch
      %23 = sbr.rel (0) target = $region9
    $region8: #{tpu_custom_call.1} parent=1 // pred_region
      %s24 = sadd.s32 0, 0
      %p25 = scmp.lt.s32.totalorder %s24, 0
      %s26 = scalar_select %p25, %s24, 0
      %s27 = smul.u32 2, %s26
      %p28 = scmp.lt.s32.totalorder %s27, 1
      %s29 = scalar_select %p28, %s27, 1
      %s30 = smul.addr %s29, 8
      %s31 = scalar_lea.vmem %s1, %s30
      %s32 = sadd.s32 0, 0
      %p33 = scmp.lt.s32.totalorder %s32, 0
      %s34 = scalar_select %p33, %s32, 0
      %s35 = smul.u32 2, %s34
    $region9: #{tpu_custom_call.1} parent=1 // pred_fallthru
      _
    %s36 = sadd.s32 0, 0
    %p37 = scmp.lt.s32.totalorder %s36, 0
    %s38 = scalar_select %p37, %s36, 0
    %s39 = smul.u32 2, %s38
    %p40 = scmp.lt.s32.totalorder %s39, 1
    %s41 = scalar_select %p40, %s39, 1
    %s42 = smul.addr %s41, 8
    %s43 = scalar_lea.vmem %s0, %s42
    %s44 = sadd.s32 0, 0
    %p45 = scmp.lt.s32.totalorder %s44, 0
    %s46 = scalar_select %p45, %s44, 0
    %s47 = smul.u32 2, %s46
    %p48 = scmp.lt.s32.totalorder %s47, 1
    %s49 = scalar_select %p48, %s47, 1
    %s50 = smul.addr %s49, 8
    %s51 = scalar_lea.vmem %s1, %s50
    %s52 = sadd.s32 0, 0
    %p53 = scmp.lt.s32.totalorder %s52, 0
    %s54 = scalar_select %p53, %s52, 0
    %s55 = smul.u32 2, %s54
    %p56 = scmp.lt.s32.totalorder %s55, 1
    %s57 = scalar_select %p56, %s55, 1
    %s58 = smul.addr %s57, 8
    %s59 = scalar_lea.vmem %s0, %s58
    %s60 = sadd.s32 0, 0
    %p61 = scmp.lt.s32.totalorder %s60, 0
    %s62 = scalar_select %p61, %s60, 0
    %s63 = smul.u32 2, %s62
    %s64 = sadd.s32 0, 0
    %p65 = scmp.lt.s32.totalorder %s64, 0
    %s66 = scalar_select %p65, %s64, 0
    %s67 = smul.u32 2, %s66
    %p68 = scmp.lt.s32.totalorder %s67, 1
    %s69 = scalar_select %p68, %s67, 1
    %s70 = smul.addr %s69, 8
    %s71 = scalar_lea.vmem %s1, %s70
    %s72 = sadd.s32 0, 0
    %p73 = scmp.lt.s32.totalorder %s72, 0
    %s74 = scalar_select %p73, %s72, 0
    %s75 = smul.u32 2, %s74
    %p76 = scmp.eq.s32.totalorder 0, 0
    // Predicated region
    $region10: #{tpu_custom_call.1} parent=1 // pred_check
      %p77 = pneg %p76
    $region11: #{tpu_custom_call.1} parent=1 // pred_check_branch
      %79 = sbr.rel (%p77) target = $region13
    $region12: #{tpu_custom_call.1} parent=1 // pred_region
      %vm80 = vcmask 0
      %81 = vst.msk [vmem:[#allocation2] sm:$0x1] %vm80, 0.0
    $region13: #{tpu_custom_call.1} parent=1 // pred_fallthru
      _
    %v82 = vld [vmem:[%s59] sm:$0xff]
    %v83 = vld [vmem:[%s59 + $0x8] sm:$0xff]
    %84 = vmax.xlane.f32.xlu0 %v82
    %v85 = vpop.xlane.xlu0 %84
    %86 = vmax.xlane.f32.xlu0 %v83
    %v87 = vpop.xlane.xlu0 %86
    %v88 = vsub.f32 %v85, %v82
    %v89 = vsub.f32 %v87, %v83
    %v90 = vld [vmem:[%s71] sm:$0xff]
    %v91 = vld [vmem:[%s71 + $0x8] sm:$0xff]
    %v92 = vlaneseq
    %v93 = vand.u32 %v92, 127
    %94 = vset.pattern.permute.xlu0 0
    %95 = vperm.xlu0 %94, %v90
    %v96 = vpop.permute.xlu0 %95
    %97 = vset.pattern.permute.xlu0 0
    %98 = vperm.xlu0 %97, %v91
    %v99 = vpop.permute.xlu0 %98
    %vm100 = vcmp.eq.s32.totalorder %v93, %v96
    %vm101 = vcmp.eq.s32.totalorder %v93, %v99
    %v102 = vsel %vm100, 0.9007813, 0.00078125
    %v103 = vsel %vm101, 0.9007813, 0.00078125
    %v104 = vsub.f32 0.0, %v88
    %v105 = vsub.f32 0.0, %v89
    %v106 = vmul.f32 %v104, 1.442695
    %v107 = vpow.pop %v106
    %v108 = vmul.f32 %v105, 1.442695
    %v109 = vpow.pop %v108
    %110 = vadd.xlane.f32.xlu0 %v107
    %v111 = vpop.xlane.xlu0 %110
    %112 = vadd.xlane.f32.xlu0 %v109
    %v113 = vpop.xlane.xlu0 %112
    %v114 = vlog2.pop %v111
    %v115 = vmul.f32 %v114, 0.6931472
    %v116 = vlog2.pop %v113
    %v117 = vmul.f32 %v116, 0.6931472
    %v118 = vmul.f32 %v102, %v88
    %v119 = vmul.f32 %v103, %v89
    %120 = vadd.xlane.f32.xlu0 %v118
    %v121 = vpop.xlane.xlu0 %120
    %122 = vadd.xlane.f32.xlu0 %v119
    %v123 = vpop.xlane.xlu0 %122
    %v124 = vadd.f32 %v115, %v121
    %v125 = vadd.f32 %v117, %v123
    %s126 = sadd.s32 0, 0
    %s127 = smul.u32 %s126, 16
    %v128 = vlaneseq
    %v129 = vshrl.u32 %v128, 7
    %v130 = vadd.s32 %v129, 8
    %v131 = vstv %s127
    %v132 = vadd.s32 %v131, %v129
    %v133 = vadd.s32 %v131, %v130
    %vm134 = vcmp.lt.s32.totalorder %v132, 16
    %vm135 = vcmp.lt.s32.totalorder %v133, 16
    %v136 = vsel %vm134, %v124, 0.0
    %v137 = vsel %vm135, %v125, 0.0
    %v138 = vld [vmem:[#allocation2] sm:$0x1]
    %vm139 = vcmask 7168
    %v140 = vsel %vm139, %v136, 0.0
    %v141 = vsel %vm139, %v137, 0.0
    %v142 = vadd.f32 %v140, %v141
    %143 = vadd.xlane.f32.xlu0 %v142
    %v144 = vpop.xlane.xlu0 %143
    %v145 = vrot.slane %v144, 4
    %v146 = vadd.f32 %v144, %v145
    %v147 = vrot.slane %v146, 2
    %v148 = vadd.f32 %v146, %v147
    %v149 = vrot.slane %v148, 1
    %v150 = vadd.f32 %v148, %v149
    %s151 = vtos %v150
    %v152 = vstv %s151
    %v153 = vadd.f32 %v138, %v152
    %vm154 = vcmask 0
    %155 = vst.msk [vmem:[#allocation2] sm:$0x1] %vm154, %v153
    // Predicated region
    $region14: #{tpu_custom_call.1} parent=1 // pred_check
      %p156 = pneg %p76
    $region15: #{tpu_custom_call.1} parent=1 // pred_check_branch
      %158 = sbr.rel (%p156) target = $region17
    $region16: #{tpu_custom_call.1} parent=1 // pred_region
      %v159 = vld [vmem:[#allocation2] sm:$0x1]
      %v160 = vadd.f32 %v159, 0.0
      %s161 = vtos %v160
      %s162 = smul.f32 %s161, 0.0625
      %v163 = vstv %s162
      %164 = vst [vmem:[#allocation3] sm:$0xff] %v163
    $region17: #{tpu_custom_call.1} parent=1 // pred_fallthru
      _
    // Predicated region
    $region18: #{tpu_custom_call.1} parent=1 // pred_check
      _
    $region19: #{tpu_custom_call.1} parent=1 // pred_check_branch
      %166 = sbr.rel (0) target = $region21
    $region20: #{tpu_custom_call.1} parent=1 // pred_region
      %168 = vsyncadd [#allocation4], 0
      %s170 = sshll.u32 [#allocation3], 4
      %s171 = int_to_ptr.vmem [resolvable:$true] %s170
      %s172 = sshll.u32 %s2, 4
      %s173 = int_to_ptr.hbm [resolvable:$true] %s172
      %175 = dma.vmem_to_hbm [thread:$0]  %s171, 128, %s173, [#allocation4]
    $region21: #{tpu_custom_call.1} parent=1 // pred_fallthru
      _
    // Predicated region
    $region22: #{tpu_custom_call.1} parent=1 // pred_check
      _
    $region23: #{tpu_custom_call.1} parent=1 // pred_check_branch
      %177 = sbr.rel (0) target = $region25
    $region24: #{tpu_custom_call.1} parent=1 // pred_region
      %179 = dma.done [#allocation4], 128
    $region25: #{tpu_custom_call.1} parent=1 // pred_fallthru
      _
    %180 = vsyncpa [#allocation4], 1

</llo_original>
